<compile_context>
chip_gen: v6e
topology: v6e:2x2x1
jax: 0.10.0
libtpu: 0.0.40
codegen_flags: <defaults>
</compile_context>

<pallas_src>
import math
from functools import partial

import jax
import jax.numpy as jnp
from jax import lax
from jax.experimental import pallas as pl
from jax.experimental.pallas import tpu as pltpu

SQRT_252 = math.sqrt(252.0)
_LANES = 128


def _partial_stats_kernel(sig_ref, ret_ref, sum_ref, ssq_ref, *, t_total, t_tile):
    """One grid step: R = sig*ret over a [B, t_tile] tile -> (sum, sum_sq)."""
    # In-kernel upcast (inputs arrive in native dtype; f32 math on the VPU).
    r = sig_ref[...].astype(jnp.float32) * ret_ref[...].astype(jnp.float32)

    if t_total % t_tile != 0:
        # Last tile is partial: mask padded lanes out of the statistics.
        j = pl.program_id(0)
        col = lax.broadcasted_iota(jnp.int32, r.shape, 1) + j * t_tile
        r = jnp.where(col < t_total, r, 0.0)

    # Lane-dense (1, 1, 128) partial outputs.
    sum_ref[...] = jnp.broadcast_to(jnp.sum(r), sum_ref.shape)
    ssq_ref[...] = jnp.broadcast_to(jnp.sum(r * r), ssq_ref.shape)


def _pick_t_tile(batch: int, t: int) -> int:
    """Largest lane-aligned tile keeping one input block around <= ~2 MiB."""
    budget_elems = (2 * 1024 * 1024) // 4 // max(batch, 1)
    if t <= max(_LANES, min(budget_elems, 2048)):
        return t                                   # single (full-T) tile
    tt = min(2048, budget_elems) // _LANES * _LANES
    return max(tt, _LANES)


def loss_sharpe(signals: jax.Array, ys: jax.Array, *, t_tile=None) -> jax.Array:
    """signals: [B, T, Cs], ys: [B, T, 2] (channel 0 = return). Returns scalar."""
    B, T, _ = ys.shape

    # Channel selects in native dtype (no wrapper f32 casts).
    if signals.shape[-1] == 1:
        sig2d = signals.reshape(B, T)              # free squeeze, no HBM copy
    else:
        sig2d = signals[:, :, 0]
    # TODO(synk): ys channel-0 select is still one XLA slice copy; fusing it into
    # the pallas input (allow_input_fusion) or a strided in-kernel lane load
    # would remove this last extra HBM round trip.
    ret2d = ys[:, :, 0]

    tt = t_tile if t_tile is not None else _pick_t_tile(B, T)
    assert tt == T or tt % _LANES == 0, "t_tile must be T or a multiple of 128"
    num_tiles = pl.cdiv(T, tt)

    kernel = partial(_partial_stats_kernel, t_total=T, t_tile=tt)
    part_shape = jax.ShapeDtypeStruct((num_tiles, 1, _LANES), jnp.float32)

    psum, pssq = pl.pallas_call(
        kernel,
        out_shape=(part_shape, part_shape),
        grid=(num_tiles,),
        in_specs=[
            pl.BlockSpec((B, tt), lambda j: (0, j)),
            pl.BlockSpec((B, tt), lambda j: (0, j)),
        ],
        out_specs=(
            pl.BlockSpec((1, 1, _LANES), lambda j: (j, 0, 0)),
            pl.BlockSpec((1, 1, _LANES), lambda j: (j, 0, 0)),
        ),
        compiler_params=pltpu.CompilerParams(
            dimension_semantics=("parallel",),     # tiles split across TCs on v7x
        ),
    )(sig2d, ret2d)

    # Tiny combine + sharpe formula (a handful of scalar ops; fuses under jit).
    n = jnp.float32(B * T)
    s = jnp.sum(psum[:, 0, 0])
    ssq = jnp.sum(pssq[:, 0, 0])
    mean = s / n
    var = (ssq - n * mean * mean) / (n - 1.0)      # unbiased, matches torch.std
    return jnp.float32(SQRT_252) * mean * lax.rsqrt(var)


if __name__ == "__main__":
    key = jax.random.PRNGKey(0)
    k1, k2, k3, k4 = jax.random.split(key, 4)

    # Case 1: tiny spec-consistent shapes (batch=2, seq=8, signal channels=1).
    B, T = 2, 8
    signals = jax.random.normal(k1, (B, T, 1), dtype=jnp.float32)
    ys = jax.random.normal(k2, (B, T, 2), dtype=jnp.float32) * 0.01

    sharpe = jax.block_until_ready(loss_sharpe(signals, ys))
    r_ref = signals[:, :, 0] * ys[:, :, 0]
    ref = jnp.sqrt(252.0) * jnp.mean(r_ref) / jnp.std(r_ref, ddof=1)
    assert jnp.allclose(sharpe, ref, rtol=1e-4, atol=1e-5), (sharpe, ref)

    # Case 2: exercise the tiled + masked streaming path (T not a tile multiple,
    # multi-channel signals) to validate the production-shape code path.
    B2, T2 = 4, 300
    signals2 = jax.random.normal(k3, (B2, T2, 3), dtype=jnp.float32)
    ys2 = jax.random.normal(k4, (B2, T2, 2), dtype=jnp.float32) * 0.01
    sharpe2 = jax.block_until_ready(loss_sharpe(signals2, ys2, t_tile=128))
    r2 = signals2[:, :, 0] * ys2[:, :, 0]
    ref2 = jnp.sqrt(252.0) * jnp.mean(r2) / jnp.std(r2, ddof=1)
    assert jnp.allclose(sharpe2, ref2, rtol=1e-4, atol=1e-5), (sharpe2, ref2)

    print("KERNEL_OK")
</pallas_src>

<mosaic_0001>
module attributes {stable_mosaic.version = 11 : i64} {
  func.func @_partial_stats_kernel(%arg0: i32, %arg1: memref<2x8xf32, #tpu.memory_space<vmem>>, %arg2: memref<2x8xf32, #tpu.memory_space<vmem>>, %arg3: memref<1x1x128xf32, #tpu.memory_space<vmem>>, %arg4: memref<1x1x128xf32, #tpu.memory_space<vmem>>) attributes {dimension_semantics = [#tpu.dimension_semantics<parallel>], iteration_bounds = array<i64: 1>, scalar_prefetch = 0 : i64, scratch_operands = 0 : i64, tpu.core_type = #tpu.core_type<tc>, window_params = [{transform_indices = @transform_0, window_bounds = array<i64: 2, 8>}, {transform_indices = @transform_1, window_bounds = array<i64: 2, 8>}, {transform_indices = @transform_2, window_bounds = array<i64: 1, 1, 128>}, {transform_indices = @transform_3, window_bounds = array<i64: 1, 1, 128>}]} {
    %c0 = arith.constant 0 : index
    %c0_0 = arith.constant 0 : index
    %0 = vector.load %arg1[%c0, %c0_0] : memref<2x8xf32, #tpu.memory_space<vmem>>, vector<2x8xf32>
    %c0_1 = arith.constant 0 : index
    %c0_2 = arith.constant 0 : index
    %1 = vector.load %arg2[%c0_1, %c0_2] : memref<2x8xf32, #tpu.memory_space<vmem>>, vector<2x8xf32>
    %2 = arith.mulf %0, %1 : vector<2x8xf32>
    %3 = vector.shape_cast %2 : vector<2x8xf32> to vector<1x2x8xf32>
    %cst = arith.constant dense<0.000000e+00> : vector<1xf32>
    %4 = vector.multi_reduction <add>, %3, %cst [1, 2] : vector<1x2x8xf32> to vector<1xf32>
    %5 = vector.shape_cast %4 : vector<1xf32> to vector<1x1x1xf32>
    %6 = vector.extract %5[0, 0, 0] : f32 from vector<1x1x1xf32>
    %7 = vector.broadcast %6 : f32 to vector<1x1x128xf32>
    %c0_3 = arith.constant 0 : index
    %c0_4 = arith.constant 0 : index
    %c0_5 = arith.constant 0 : index
    %8 = vector.load %arg3[%c0_3, %c0_4, %c0_5] : memref<1x1x128xf32, #tpu.memory_space<vmem>>, vector<1x1x128xf32>
    tpu.vector_store %arg3[%c0_3, %c0_4, %c0_5], %7 {strides = array<i32>} : memref<1x1x128xf32, #tpu.memory_space<vmem>>, vector<1x1x128xf32>,
    %9 = arith.mulf %2, %2 : vector<2x8xf32>
    %10 = vector.shape_cast %9 : vector<2x8xf32> to vector<1x2x8xf32>
    %cst_6 = arith.constant dense<0.000000e+00> : vector<1xf32>
    %11 = vector.multi_reduction <add>, %10, %cst_6 [1, 2] : vector<1x2x8xf32> to vector<1xf32>
    %12 = vector.shape_cast %11 : vector<1xf32> to vector<1x1x1xf32>
    %13 = vector.extract %12[0, 0, 0] : f32 from vector<1x1x1xf32>
    %14 = vector.broadcast %13 : f32 to vector<1x1x128xf32>
    %c0_7 = arith.constant 0 : index
    %c0_8 = arith.constant 0 : index
    %c0_9 = arith.constant 0 : index
    %15 = vector.load %arg4[%c0_7, %c0_8, %c0_9] : memref<1x1x128xf32, #tpu.memory_space<vmem>>, vector<1x1x128xf32>
    tpu.vector_store %arg4[%c0_7, %c0_8, %c0_9], %14 {strides = array<i32>} : memref<1x1x128xf32, #tpu.memory_space<vmem>>, vector<1x1x128xf32>,
    return
  }
  func.func @transform_0(%arg0: i32) -> (i32, i32) {
    %c0_i32 = arith.constant 0 : i32
    %c0_i32_0 = arith.constant 0 : i32
    return %c0_i32, %arg0 : i32, i32
  }
  func.func @transform_1(%arg0: i32) -> (i32, i32) {
    %c0_i32 = arith.constant 0 : i32
    %c0_i32_0 = arith.constant 0 : i32
    return %c0_i32, %arg0 : i32, i32
  }
  func.func @transform_2(%arg0: i32) -> (i32, i32, i32) {
    %c0_i32 = arith.constant 0 : i32
    %c0_i32_0 = arith.constant 0 : i32
    %c0_i32_1 = arith.constant 0 : i32
    return %arg0, %c0_i32, %c0_i32_0 : i32, i32, i32
  }
  func.func @transform_3(%arg0: i32) -> (i32, i32, i32) {
    %c0_i32 = arith.constant 0 : i32
    %c0_i32_0 = arith.constant 0 : i32
    %c0_i32_1 = arith.constant 0 : i32
    return %arg0, %c0_i32, %c0_i32_0 : i32, i32, i32
  }
}

</mosaic_0001>

<llo_original>
// kernel: tpu_custom_call.1
$region0: #{tpu_custom_call.1}
  #allocation0 [shape = 'u32[]', space=smem, size = 0x4, offset = 0x4, fixed_abs, tag = 'smem constant byte address 0x4 - core index']
  #allocation1 [shape = 'u32[144,128]{1,0:T(1,128)}', space=vmem, size = 0x12000, scoped, tag = 'internal scratch']
  %s0 = inlined_call_operand.hbm [shape: f32[2,8], index: 0, kind: input, shape index: {}]
  %s1 = inlined_call_operand.hbm [shape: f32[2,8], index: 1, kind: input, shape index: {}]
  %s2 = inlined_call_operand.hbm [shape: f32[1,1,128], index: 2, kind: output, shape index: {0}]
  %s3 = inlined_call_operand.hbm [shape: f32[1,1,128], index: 3, kind: output, shape index: {1}]
  %4 = xla_tuple %s2, %s3
  %s5 = sld [smem:[#allocation0]]
  $region34: #{tpu_custom_call.1} parent=0
    _
  %s7 = ssub.s32 1, %s5
  %s8 = scalar_select 0, %s7, %s5
  $region1: #{tpu_custom_call.1} parent=0
    #allocation2 [shape = 'u8[1024]{0}', space=vmem, size = 0x400, scoped, tag = 'input window, operand 0, single buffered']
    #allocation3 [shape = 's32[1]{0}', space=sflag, size = 0x4, scoped, tag = 'scoped memory for tpu_custom_call.1']
    #allocation4 [shape = 's32[1]{0}', space=sflag, size = 0x4, scoped, tag = 'scoped memory for tpu_custom_call.1']
    #allocation5 [shape = 'u8[1024]{0}', space=vmem, size = 0x400, scoped, tag = 'input window, operand 1, single buffered']
    #allocation6 [shape = 's32[1]{0}', space=sflag, size = 0x4, scoped, tag = 'scoped memory for tpu_custom_call.1']
    #allocation7 [shape = 'u8[512]{0}', space=vmem, size = 0x400, scoped, tag = 'output window, operand 0, single buffered']
    #allocation8 [shape = 'u8[512]{0}', space=vmem, size = 0x400, scoped, tag = 'output window, operand 1, single buffered']
    #allocation9 [shape = 's32[1]{0}', space=sflag, size = 0x4, scoped, tag = 'scoped memory for tpu_custom_call.1']
    %9 = vsyncpa [#allocation3], 0
    %10 = vsyncpa [#allocation6], 0
    %11 = vsyncpa [#allocation4], 0
    %12 = vsyncpa [#allocation9], 0
    // Predicated region
    $region2: #{tpu_custom_call.1} parent=1 // pred_check
      _
    $region3: #{tpu_custom_call.1} parent=1 // pred_check_branch
      %14 = sbr.rel (0) target = $region5
    $region4: #{tpu_custom_call.1} parent=1 // pred_region
      %s16 = ssub.s32 32, 32
      %17 = vsyncadd [#allocation3], %s16
      %s19 = sshll.u32 [#allocation2], 4
      %s20 = int_to_ptr.vmem [resolvable:$true] %s19
      %22 = dma.hbm_to_vmem [thread:$0]  %s0, 32, %s20, [#allocation3]
    $region5: #{tpu_custom_call.1} parent=1 // pred_fallthru
      _
    // Predicated region
    $region6: #{tpu_custom_call.1} parent=1 // pred_check
      _
    $region7: #{tpu_custom_call.1} parent=1 // pred_check_branch
      %24 = sbr.rel (0) target = $region9
    $region8: #{tpu_custom_call.1} parent=1 // pred_region
      %s26 = ssub.s32 32, 32
      %27 = vsyncadd [#allocation6], %s26
      %s29 = sshll.u32 [#allocation5], 4
      %s30 = int_to_ptr.vmem [resolvable:$true] %s29
      %32 = dma.hbm_to_vmem [thread:$0]  %s1, 32, %s30, [#allocation6]
    $region9: #{tpu_custom_call.1} parent=1 // pred_fallthru
      _
    // Predicated region
    $region10: #{tpu_custom_call.1} parent=1 // pred_check
      _
    $region11: #{tpu_custom_call.1} parent=1 // pred_check_branch
      %34 = sbr.rel (0) target = $region13
    $region12: #{tpu_custom_call.1} parent=1 // pred_region
      %35 = dma.done [#allocation3], 32
    $region13: #{tpu_custom_call.1} parent=1 // pred_fallthru
      _
    // Predicated region
    $region14: #{tpu_custom_call.1} parent=1 // pred_check
      _
    $region15: #{tpu_custom_call.1} parent=1 // pred_check_branch
      %37 = sbr.rel (0) target = $region17
    $region16: #{tpu_custom_call.1} parent=1 // pred_region
      %38 = dma.done [#allocation6], 32
    $region17: #{tpu_custom_call.1} parent=1 // pred_fallthru
      _
    %v39 = vld [vmem:[#allocation2] sm:$0x3]
    %v40 = vld [vmem:[#allocation5] sm:$0x3]
    %v41 = vmul.f32 %v39, %v40
    %vm42 = vcmask 58368
    %v43 = vsel %vm42, %v41, 0.0
    %44 = vadd.xlane.f32.xlu0 %v43
    %v45 = vpop.xlane.xlu0 %44
    %v46 = vrot.slane %v45, 4
    %v47 = vadd.f32 %v45, %v46
    %v48 = vrot.slane %v47, 2
    %v49 = vadd.f32 %v47, %v48
    %v50 = vrot.slane %v49, 1
    %v51 = vadd.f32 %v49, %v50
    %s52 = vtos %v51
    %v53 = vstv %s52
    %54 = vst [vmem:[#allocation7] sm:$0x1] %v53
    %v55 = vmul.f32 %v41, %v41
    %v56 = vsel %vm42, %v55, 0.0
    %57 = vadd.xlane.f32.xlu0 %v56
    %v58 = vpop.xlane.xlu0 %57
    %v59 = vrot.slane %v58, 4
    %v60 = vadd.f32 %v58, %v59
    %v61 = vrot.slane %v60, 2
    %v62 = vadd.f32 %v60, %v61
    %v63 = vrot.slane %v62, 1
    %v64 = vadd.f32 %v62, %v63
    %s65 = vtos %v64
    %v66 = vstv %s65
    %67 = vst [vmem:[#allocation8] sm:$0x1] %v66
    // Predicated region
    $region18: #{tpu_custom_call.1} parent=1 // pred_check
      _
    $region19: #{tpu_custom_call.1} parent=1 // pred_check_branch
      %69 = sbr.rel (0) target = $region21
    $region20: #{tpu_custom_call.1} parent=1 // pred_region
      %s71 = ssub.s32 16, 16
      %72 = vsyncadd [#allocation4], %s71
      %s74 = sshll.u32 [#allocation7], 4
      %s75 = int_to_ptr.vmem [resolvable:$true] %s74
      %77 = dma.vmem_to_hbm [thread:$0]  %s75, 16, %s2, [#allocation4]
    $region21: #{tpu_custom_call.1} parent=1 // pred_fallthru
      _
    // Predicated region
    $region22: #{tpu_custom_call.1} parent=1 // pred_check
      _
    $region23: #{tpu_custom_call.1} parent=1 // pred_check_branch
      %79 = sbr.rel (0) target = $region25
    $region24: #{tpu_custom_call.1} parent=1 // pred_region
      %s81 = ssub.s32 16, 16
      %82 = vsyncadd [#allocation9], %s81
      %s84 = sshll.u32 [#allocation8], 4
      %s85 = int_to_ptr.vmem [resolvable:$true] %s84
      %87 = dma.vmem_to_hbm [thread:$0]  %s85, 16, %s3, [#allocation9]
    $region25: #{tpu_custom_call.1} parent=1 // pred_fallthru
      _
    // Predicated region
    $region26: #{tpu_custom_call.1} parent=1 // pred_check
      _
    $region27: #{tpu_custom_call.1} parent=1 // pred_check_branch
      %89 = sbr.rel (0) target = $region29
    $region28: #{tpu_custom_call.1} parent=1 // pred_region
      %90 = dma.done [#allocation4], 16
    $region29: #{tpu_custom_call.1} parent=1 // pred_fallthru
      _
    // Predicated region
    $region30: #{tpu_custom_call.1} parent=1 // pred_check
      _
    $region31: #{tpu_custom_call.1} parent=1 // pred_check_branch
      %92 = sbr.rel (0) target = $region33
    $region32: #{tpu_custom_call.1} parent=1 // pred_region
      %93 = dma.done [#allocation9], 16
    $region33: #{tpu_custom_call.1} parent=1 // pred_fallthru
      _
    %94 = vsyncpa [#allocation3], 1
    %95 = vsyncpa [#allocation6], 1
    %96 = vsyncpa [#allocation4], 1
    %97 = vsyncpa [#allocation9], 1

</llo_original>
